<compile_context>
chip_gen: v7x
topology: tpu7x:2x2x1
jax: 0.10.0
libtpu: 0.0.40
codegen_flags: <defaults>
</compile_context>

<pallas_src>
import jax
import jax.numpy as jnp
from jax.experimental import pallas as pl
from jax.experimental.pallas import tpu as pltpu

_EPS = 1e-5
_LANES = 128


def _round_up(n, m):
    return ((n + m - 1) // m) * m


def _batch_net_kernel(x_ref,
                      w1_ref, g1_ref, be1_ref,
                      w2_ref, g2_ref, be2_ref,
                      w3_ref, b3_ref,
                      o_ref):
    def bn_relu(h, g, be):
        # train-mode BatchNorm1d: biased batch variance, fused gamma*rsqrt scale (EUP).
        mu = jnp.mean(h, axis=0, keepdims=True)
        c = h - mu
        var = jnp.mean(c * c, axis=0, keepdims=True)
        scale = g * jax.lax.rsqrt(var + _EPS)
        return jnp.maximum(c * scale + be, 0.0)

    # ---- layer1: Linear (bias cancelled by BN mean subtraction) -> BN -> ReLU ----
    h = jnp.dot(x_ref[...].astype(jnp.bfloat16), w1_ref[...],
                preferred_element_type=jnp.float32)
    h = bn_relu(h, g1_ref[...], be1_ref[...])

    # ---- layer2: Linear (no bias) -> BN -> ReLU ----
    h = jnp.dot(h.astype(jnp.bfloat16), w2_ref[...],
                preferred_element_type=jnp.float32)
    h = bn_relu(h, g2_ref[...], be2_ref[...])

    # ---- layer3: Linear (bias kept), lane-dense padded output slab ----
    out = jnp.dot(h.astype(jnp.bfloat16), w3_ref[...],
                  preferred_element_type=jnp.float32) + b3_ref[...]
    o_ref[...] = out.astype(o_ref.dtype)


def batch_net_forward(x, kparams):
    """x: (B, in_dim) f32. kparams: padded kernel params (see init_params)."""
    B, in_dim = x.shape
    out_dim = kparams["out_dim"]
    h1p = kparams["w1"].shape[1]
    h2p = kparams["w2"].shape[1]
    out_pad = kparams["b3"].shape[1]

    args = (x,
            kparams["w1"], kparams["g1"], kparams["be1"],
            kparams["w2"], kparams["g2"], kparams["be2"],
            kparams["w3"], kparams["b3"])

    flops = 2 * B * (in_dim * h1p + h1p * h2p + h2p * out_pad) + 10 * B * (h1p + h2p)
    bytes_accessed = sum(int(a.size) * a.dtype.itemsize for a in args) + B * out_pad * 4

    out_padded = pl.pallas_call(
        _batch_net_kernel,
        out_shape=jax.ShapeDtypeStruct((B, out_pad), jnp.float32),
        in_specs=[pl.BlockSpec(memory_space=pltpu.MemorySpace.VMEM)] * len(args),
        out_specs=pl.BlockSpec(memory_space=pltpu.MemorySpace.VMEM),
        cost_estimate=pl.CostEstimate(flops=flops,
                                      transcendentals=h1p + h2p,
                                      bytes_accessed=bytes_accessed),
    )(*args)
    return out_padded[:, :out_dim]


def init_params(key, in_dim, n_hidden_1, n_hidden_2, out_dim):
    """Deterministic synthetic init (PyTorch-Linear-style uniform bounds).

    Returns (ref_params, kernel_params):
      * ref_params: logical (unpadded) weights, incl. b1/b2, for the pure-JAX reference.
      * kernel_params: weights pre-transposed to (in, out), stored bf16 for MXU operands,
        with hidden/output feature dims padded to multiples of 128 ONCE at init.
        gamma/beta of padded columns are zero so dead lanes stay exactly zero.
    """
    ks = jax.random.split(key, 6)

    def lin(kw, kb, fan_in, fan_out):
        bound = 1.0 / jnp.sqrt(fan_in)
        w = jax.random.uniform(kw, (fan_in, fan_out), jnp.float32, -bound, bound)
        b = jax.random.uniform(kb, (1, fan_out), jnp.float32, -bound, bound)
        return w.astype(jnp.bfloat16), b

    w1, b1 = lin(ks[0], ks[1], in_dim, n_hidden_1)
    w2, b2 = lin(ks[2], ks[3], n_hidden_1, n_hidden_2)
    w3, b3 = lin(ks[4], ks[5], n_hidden_2, out_dim)

    g1 = jnp.ones((1, n_hidden_1), jnp.float32)
    be1 = jnp.zeros((1, n_hidden_1), jnp.float32)
    g2 = jnp.ones((1, n_hidden_2), jnp.float32)
    be2 = jnp.zeros((1, n_hidden_2), jnp.float32)

    ref_params = {"w1": w1, "b1": b1, "g1": g1, "be1": be1,
                  "w2": w2, "b2": b2, "g2": g2, "be2": be2,
                  "w3": w3, "b3": b3}

    h1p = max(_LANES, _round_up(n_hidden_1, _LANES))
    h2p = max(_LANES, _round_up(n_hidden_2, _LANES))
    op = max(_LANES, _round_up(out_dim, _LANES))

    kernel_params = {
        "w1": jnp.pad(w1, ((0, 0), (0, h1p - n_hidden_1))),
        "g1": jnp.pad(g1, ((0, 0), (0, h1p - n_hidden_1))),   # zero gamma -> dead lanes stay 0
        "be1": jnp.pad(be1, ((0, 0), (0, h1p - n_hidden_1))),
        "w2": jnp.pad(w2, ((0, h1p - n_hidden_1), (0, h2p - n_hidden_2))),
        "g2": jnp.pad(g2, ((0, 0), (0, h2p - n_hidden_2))),
        "be2": jnp.pad(be2, ((0, 0), (0, h2p - n_hidden_2))),
        "w3": jnp.pad(w3, ((0, h2p - n_hidden_2), (0, op - out_dim))),
        "b3": jnp.pad(b3, ((0, 0), (0, op - out_dim))),
        "out_dim": out_dim,
    }
    return ref_params, kernel_params


def _reference(x, p):
    """Pure-JAX reference of the full PyTorch forward (including b1/b2, which the
    kernel drops because train-mode BN's mean subtraction cancels them exactly)."""
    def bn_relu(h, g, be):
        mu = jnp.mean(h, axis=0, keepdims=True)
        c = h - mu
        var = jnp.mean(c * c, axis=0, keepdims=True)
        return jnp.maximum(c * (g * jax.lax.rsqrt(var + _EPS)) + be, 0.0)

    h = jnp.dot(x.astype(jnp.bfloat16), p["w1"], preferred_element_type=jnp.float32) + p["b1"]
    h = bn_relu(h, p["g1"], p["be1"])
    h = jnp.dot(h.astype(jnp.bfloat16), p["w2"], preferred_element_type=jnp.float32) + p["b2"]
    h = bn_relu(h, p["g2"], p["be2"])
    return jnp.dot(h.astype(jnp.bfloat16), p["w3"], preferred_element_type=jnp.float32) + p["b3"]


if __name__ == "__main__":
    in_dim, n_hidden_1, n_hidden_2, out_dim = 32, 64, 32, 16
    batch = 8

    key = jax.random.PRNGKey(0)
    kx, kp = jax.random.split(key)
    x = jax.random.normal(kx, (batch, in_dim), jnp.float32)
    ref_params, kernel_params = init_params(kp, in_dim, n_hidden_1, n_hidden_2, out_dim)

    out = batch_net_forward(x, kernel_params)
    out = jax.block_until_ready(out)

    ref = _reference(x, ref_params)
    assert out.shape == (batch, out_dim)
    # bf16 MXU operands + bias-cancellation rounding -> modest tolerance.
    assert jnp.allclose(out, ref, atol=1e-2, rtol=1e-2), "mismatch vs reference"

    print("KERNEL_OK")
</pallas_src>

<mosaic_0001>
module attributes {stable_mosaic.version = 11 : i64} {
  func.func @_batch_net_kernel(%arg0: memref<8x32xf32, #tpu.memory_space<vmem>>, %arg1: memref<32x128xbf16, #tpu.memory_space<vmem>>, %arg2: memref<1x128xf32, #tpu.memory_space<vmem>>, %arg3: memref<1x128xf32, #tpu.memory_space<vmem>>, %arg4: memref<128x128xbf16, #tpu.memory_space<vmem>>, %arg5: memref<1x128xf32, #tpu.memory_space<vmem>>, %arg6: memref<1x128xf32, #tpu.memory_space<vmem>>, %arg7: memref<128x128xbf16, #tpu.memory_space<vmem>>, %arg8: memref<1x128xf32, #tpu.memory_space<vmem>>, %arg9: memref<8x128xf32, #tpu.memory_space<vmem>>) attributes {dimension_semantics = [], scalar_prefetch = 0 : i64, scratch_operands = 0 : i64, tpu.core_type = #tpu.core_type<tc>} {
    %c0 = arith.constant 0 : index
    %c0_0 = arith.constant 0 : index
    %0 = vector.load %arg0[%c0, %c0_0] : memref<8x32xf32, #tpu.memory_space<vmem>>, vector<8x32xf32>
    %1 = arith.truncf %0 : vector<8x32xf32> to vector<8x32xbf16>
    %c0_1 = arith.constant 0 : index
    %c0_2 = arith.constant 0 : index
    %2 = vector.load %arg1[%c0_1, %c0_2] : memref<32x128xbf16, #tpu.memory_space<vmem>>, vector<32x128xbf16>
    %cst = arith.constant dense<0.000000e+00> : vector<8x128xf32>
    %3 = tpu.matmul %1, %2, %cst {dimension_numbers = #tpu.dot_dimension_numbers<[1], [0], [0], [1], [0, 0, 1, 1], [], []>} : vector<8x32xbf16>, vector<32x128xbf16>, vector<8x128xf32> -> vector<8x128xf32>
    %c0_3 = arith.constant 0 : index
    %c0_4 = arith.constant 0 : index
    %4 = vector.load %arg2[%c0_3, %c0_4] : memref<1x128xf32, #tpu.memory_space<vmem>>, vector<1x128xf32>
    %c0_5 = arith.constant 0 : index
    %c0_6 = arith.constant 0 : index
    %5 = vector.load %arg3[%c0_5, %c0_6] : memref<1x128xf32, #tpu.memory_space<vmem>>, vector<1x128xf32>
    %cst_7 = arith.constant dense<0.000000e+00> : vector<128xf32>
    %6 = vector.multi_reduction <add>, %3, %cst_7 [0] : vector<8x128xf32> to vector<128xf32>
    %7 = vector.shape_cast %6 : vector<128xf32> to vector<1x128xf32>
    %cst_8 = arith.constant 8.000000e+00 : f32
    %8 = vector.broadcast %cst_8 : f32 to vector<1x128xf32>
    %9 = arith.divf %7, %8 : vector<1x128xf32>
    %10 = vector.broadcast %9 : vector<1x128xf32> to vector<8x128xf32>
    %11 = arith.subf %3, %10 : vector<8x128xf32>
    %12 = arith.mulf %11, %11 : vector<8x128xf32>
    %cst_9 = arith.constant dense<0.000000e+00> : vector<128xf32>
    %13 = vector.multi_reduction <add>, %12, %cst_9 [0] : vector<8x128xf32> to vector<128xf32>
    %14 = vector.shape_cast %13 : vector<128xf32> to vector<1x128xf32>
    %cst_10 = arith.constant 8.000000e+00 : f32
    %15 = vector.broadcast %cst_10 : f32 to vector<1x128xf32>
    %16 = arith.divf %14, %15 : vector<1x128xf32>
    %cst_11 = arith.constant 9.99999974E-6 : f32
    %17 = vector.broadcast %cst_11 : f32 to vector<1x128xf32>
    %18 = arith.addf %16, %17 : vector<1x128xf32>
    %19 = math.rsqrt %18 : vector<1x128xf32>
    %20 = arith.mulf %4, %19 : vector<1x128xf32>
    %21 = vector.broadcast %20 : vector<1x128xf32> to vector<8x128xf32>
    %22 = arith.mulf %11, %21 : vector<8x128xf32>
    %23 = vector.broadcast %5 : vector<1x128xf32> to vector<8x128xf32>
    %24 = arith.addf %22, %23 : vector<8x128xf32>
    %cst_12 = arith.constant 0.000000e+00 : f32
    %25 = vector.broadcast %cst_12 : f32 to vector<8x128xf32>
    %26 = arith.maximumf %24, %25 : vector<8x128xf32>
    %27 = arith.truncf %26 : vector<8x128xf32> to vector<8x128xbf16>
    %c0_13 = arith.constant 0 : index
    %c0_14 = arith.constant 0 : index
    %28 = vector.load %arg4[%c0_13, %c0_14] : memref<128x128xbf16, #tpu.memory_space<vmem>>, vector<128x128xbf16>
    %cst_15 = arith.constant dense<0.000000e+00> : vector<8x128xf32>
    %29 = tpu.matmul %27, %28, %cst_15 {dimension_numbers = #tpu.dot_dimension_numbers<[1], [0], [0], [1], [0, 0, 1, 1], [], []>} : vector<8x128xbf16>, vector<128x128xbf16>, vector<8x128xf32> -> vector<8x128xf32>
    %c0_16 = arith.constant 0 : index
    %c0_17 = arith.constant 0 : index
    %30 = vector.load %arg5[%c0_16, %c0_17] : memref<1x128xf32, #tpu.memory_space<vmem>>, vector<1x128xf32>
    %c0_18 = arith.constant 0 : index
    %c0_19 = arith.constant 0 : index
    %31 = vector.load %arg6[%c0_18, %c0_19] : memref<1x128xf32, #tpu.memory_space<vmem>>, vector<1x128xf32>
    %cst_20 = arith.constant dense<0.000000e+00> : vector<128xf32>
    %32 = vector.multi_reduction <add>, %29, %cst_20 [0] : vector<8x128xf32> to vector<128xf32>
    %33 = vector.shape_cast %32 : vector<128xf32> to vector<1x128xf32>
    %cst_21 = arith.constant 8.000000e+00 : f32
    %34 = vector.broadcast %cst_21 : f32 to vector<1x128xf32>
    %35 = arith.divf %33, %34 : vector<1x128xf32>
    %36 = vector.broadcast %35 : vector<1x128xf32> to vector<8x128xf32>
    %37 = arith.subf %29, %36 : vector<8x128xf32>
    %38 = arith.mulf %37, %37 : vector<8x128xf32>
    %cst_22 = arith.constant dense<0.000000e+00> : vector<128xf32>
    %39 = vector.multi_reduction <add>, %38, %cst_22 [0] : vector<8x128xf32> to vector<128xf32>
    %40 = vector.shape_cast %39 : vector<128xf32> to vector<1x128xf32>
    %cst_23 = arith.constant 8.000000e+00 : f32
    %41 = vector.broadcast %cst_23 : f32 to vector<1x128xf32>
    %42 = arith.divf %40, %41 : vector<1x128xf32>
    %cst_24 = arith.constant 9.99999974E-6 : f32
    %43 = vector.broadcast %cst_24 : f32 to vector<1x128xf32>
    %44 = arith.addf %42, %43 : vector<1x128xf32>
    %45 = math.rsqrt %44 : vector<1x128xf32>
    %46 = arith.mulf %30, %45 : vector<1x128xf32>
    %47 = vector.broadcast %46 : vector<1x128xf32> to vector<8x128xf32>
    %48 = arith.mulf %37, %47 : vector<8x128xf32>
    %49 = vector.broadcast %31 : vector<1x128xf32> to vector<8x128xf32>
    %50 = arith.addf %48, %49 : vector<8x128xf32>
    %cst_25 = arith.constant 0.000000e+00 : f32
    %51 = vector.broadcast %cst_25 : f32 to vector<8x128xf32>
    %52 = arith.maximumf %50, %51 : vector<8x128xf32>
    %53 = arith.truncf %52 : vector<8x128xf32> to vector<8x128xbf16>
    %c0_26 = arith.constant 0 : index
    %c0_27 = arith.constant 0 : index
    %54 = vector.load %arg7[%c0_26, %c0_27] : memref<128x128xbf16, #tpu.memory_space<vmem>>, vector<128x128xbf16>
    %cst_28 = arith.constant dense<0.000000e+00> : vector<8x128xf32>
    %55 = tpu.matmul %53, %54, %cst_28 {dimension_numbers = #tpu.dot_dimension_numbers<[1], [0], [0], [1], [0, 0, 1, 1], [], []>} : vector<8x128xbf16>, vector<128x128xbf16>, vector<8x128xf32> -> vector<8x128xf32>
    %c0_29 = arith.constant 0 : index
    %c0_30 = arith.constant 0 : index
    %56 = vector.load %arg8[%c0_29, %c0_30] : memref<1x128xf32, #tpu.memory_space<vmem>>, vector<1x128xf32>
    %57 = vector.broadcast %56 : vector<1x128xf32> to vector<8x128xf32>
    %58 = arith.addf %55, %57 : vector<8x128xf32>
    %c0_31 = arith.constant 0 : index
    %c0_32 = arith.constant 0 : index
    %59 = vector.load %arg9[%c0_31, %c0_32] : memref<8x128xf32, #tpu.memory_space<vmem>>, vector<8x128xf32>
    tpu.vector_store %arg9[%c0_31, %c0_32], %58 {strides = array<i32>} : memref<8x128xf32, #tpu.memory_space<vmem>>, vector<8x128xf32>,
    return
  }
}

</mosaic_0001>

<llo_original>
// kernel: tpu_custom_call.1
$region0: #{tpu_custom_call.1}
  #allocation0 [shape = 'u32[]', space=smem, size = 0x4, offset = 0x4, fixed_abs, tag = 'smem constant byte address 0x4 - core index']
  #allocation1 [shape = 'u32[144,128]{1,0:T(1,128)}', space=vmem, size = 0x12000, scoped, tag = 'internal scratch']
  %s0 = inlined_call_operand.hbm [shape: f32[8,32], index: 0, kind: input, shape index: {}]
  %s1 = inlined_call_operand.hbm [shape: bf16[32,128], index: 1, kind: input, shape index: {}]
  %s2 = inlined_call_operand.vmem [shape: f32[1,128], index: 2, kind: input, shape index: {}]
  %s3 = inlined_call_operand.vmem [shape: f32[1,128], index: 3, kind: input, shape index: {}]
  %s4 = inlined_call_operand.hbm [shape: bf16[128,128], index: 4, kind: input, shape index: {}]
  %s5 = inlined_call_operand.vmem [shape: f32[1,128], index: 5, kind: input, shape index: {}]
  %s6 = inlined_call_operand.vmem [shape: f32[1,128], index: 6, kind: input, shape index: {}]
  %s7 = inlined_call_operand.hbm [shape: bf16[128,128], index: 7, kind: input, shape index: {}]
  %s8 = inlined_call_operand.vmem [shape: f32[1,128], index: 8, kind: input, shape index: {}]
  %s9 = inlined_call_operand.hbm [shape: f32[8,128], index: 9, kind: output, shape index: {}]
  %s10 = sld [smem:[#allocation0]]
  $region62: #{tpu_custom_call.1} parent=0
    _
  %s12 = ssub.s32 1, %s10
  %s13 = scalar_select 0, %s12, %s10
  $region1: #{tpu_custom_call.1} parent=0
    #allocation2 [shape = 'u8[4096]{0}', space=vmem, size = 0x1000, scoped, tag = 'input window, operand 0, single buffered']
    #allocation3 [shape = 's32[1]{0}', space=sflag, size = 0x4, scoped, tag = 'scoped memory for tpu_custom_call.1']
    #allocation4 [shape = 's32[1]{0}', space=sflag, size = 0x4, scoped, tag = 'scoped memory for tpu_custom_call.1']
    #allocation5 [shape = 'u8[8192]{0}', space=vmem, size = 0x2000, scoped, tag = 'input window, operand 1, single buffered']
    #allocation6 [shape = 's32[1]{0}', space=sflag, size = 0x4, scoped, tag = 'scoped memory for tpu_custom_call.1']
    #allocation7 [shape = 'u8[32768]{0}', space=vmem, size = 0x8000, scoped, tag = 'input window, operand 4, single buffered']
    #allocation8 [shape = 'u8[32768]{0}', space=vmem, size = 0x8000, scoped, tag = 'input window, operand 7, single buffered']
    #allocation9 [shape = 's32[1]{0}', space=sflag, size = 0x4, scoped, tag = 'scoped memory for tpu_custom_call.1']
    #allocation10 [shape = 'u8[4096]{0}', space=vmem, size = 0x1000, scoped, tag = 'output window, operand 0, single buffered']
    %14 = vsyncpa [#allocation3], 0
    %15 = vsyncpa [#allocation6], 0
    %16 = vsyncpa [#allocation9], 0
    %17 = vsyncpa [#allocation4], 0
    // Predicated region
    $region2: #{tpu_custom_call.1} parent=1 // pred_check
      _
    $region3: #{tpu_custom_call.1} parent=1 // pred_check_branch
      %19 = sbr.rel (0) target = $region5
    $region4: #{tpu_custom_call.1} parent=1 // pred_region
      %s21 = ssub.s32 128, 128
      %22 = vsyncadd [#allocation3], %s21
      %s24 = sshll.u32 [#allocation2], 4
      %s25 = int_to_ptr.vmem [resolvable:$true] %s24
      %27 = dma.hbm_to_vmem [thread:$0]  %s0, 128, %s25, [#allocation3]
    $region5: #{tpu_custom_call.1} parent=1 // pred_fallthru
      _
    // Predicated region
    $region6: #{tpu_custom_call.1} parent=1 // pred_check
      _
    $region7: #{tpu_custom_call.1} parent=1 // pred_check_branch
      %29 = sbr.rel (0) target = $region9
    $region8: #{tpu_custom_call.1} parent=1 // pred_region
      %s31 = ssub.s32 256, 256
      %32 = vsyncadd [#allocation6], %s31
      %s33 = sshll.u32 [#allocation5], 4
      %s34 = int_to_ptr.vmem [resolvable:$true] %s33
      %39 = dma.hbm_to_vmem [thread:$0]  %s1, 256, %s34, [#allocation6], 64, 64, 4
    $region9: #{tpu_custom_call.1} parent=1 // pred_fallthru
      _
    // Predicated region
    $region10: #{tpu_custom_call.1} parent=1 // pred_check
      _
    $region11: #{tpu_custom_call.1} parent=1 // pred_check_branch
      %41 = sbr.rel (0) target = $region13
    $region12: #{tpu_custom_call.1} parent=1 // pred_region
      _
    $region13: #{tpu_custom_call.1} parent=1 // pred_fallthru
      _
    // Predicated region
    $region14: #{tpu_custom_call.1} parent=1 // pred_check
      _
    $region15: #{tpu_custom_call.1} parent=1 // pred_check_branch
      %43 = sbr.rel (0) target = $region17
    $region16: #{tpu_custom_call.1} parent=1 // pred_region
      _
    $region17: #{tpu_custom_call.1} parent=1 // pred_fallthru
      _
    // Predicated region
    $region18: #{tpu_custom_call.1} parent=1 // pred_check
      _
    $region19: #{tpu_custom_call.1} parent=1 // pred_check_branch
      %45 = sbr.rel (0) target = $region21
    $region20: #{tpu_custom_call.1} parent=1 // pred_region
      %s47 = ssub.s32 1024, 1024
      %48 = vsyncadd [#allocation6], %s47
      %s49 = sshll.u32 [#allocation7], 4
      %s50 = int_to_ptr.vmem [resolvable:$true] %s49
      %55 = dma.hbm_to_vmem [thread:$0]  %s4, 1024, %s50, [#allocation6], 64, 64, 4
    $region21: #{tpu_custom_call.1} parent=1 // pred_fallthru
      _
    // Predicated region
    $region22: #{tpu_custom_call.1} parent=1 // pred_check
      _
    $region23: #{tpu_custom_call.1} parent=1 // pred_check_branch
      %57 = sbr.rel (0) target = $region25
    $region24: #{tpu_custom_call.1} parent=1 // pred_region
      _
    $region25: #{tpu_custom_call.1} parent=1 // pred_fallthru
      _
    // Predicated region
    $region26: #{tpu_custom_call.1} parent=1 // pred_check
      _
    $region27: #{tpu_custom_call.1} parent=1 // pred_check_branch
      %59 = sbr.rel (0) target = $region29
    $region28: #{tpu_custom_call.1} parent=1 // pred_region
      _
    $region29: #{tpu_custom_call.1} parent=1 // pred_fallthru
      _
    // Predicated region
    $region30: #{tpu_custom_call.1} parent=1 // pred_check
      _
    $region31: #{tpu_custom_call.1} parent=1 // pred_check_branch
      %61 = sbr.rel (0) target = $region33
    $region32: #{tpu_custom_call.1} parent=1 // pred_region
      %s63 = ssub.s32 1024, 1024
      %64 = vsyncadd [#allocation9], %s63
      %s65 = sshll.u32 [#allocation8], 4
      %s66 = int_to_ptr.vmem [resolvable:$true] %s65
      %71 = dma.hbm_to_vmem [thread:$0]  %s7, 1024, %s66, [#allocation9], 64, 64, 4
    $region33: #{tpu_custom_call.1} parent=1 // pred_fallthru
      _
    // Predicated region
    $region34: #{tpu_custom_call.1} parent=1 // pred_check
      _
    $region35: #{tpu_custom_call.1} parent=1 // pred_check_branch
      %73 = sbr.rel (0) target = $region37
    $region36: #{tpu_custom_call.1} parent=1 // pred_region
      _
    $region37: #{tpu_custom_call.1} parent=1 // pred_fallthru
      _
    // Predicated region
    $region38: #{tpu_custom_call.1} parent=1 // pred_check
      _
    $region39: #{tpu_custom_call.1} parent=1 // pred_check_branch
      %75 = sbr.rel (0) target = $region41
    $region40: #{tpu_custom_call.1} parent=1 // pred_region
      %76 = dma.done [#allocation3], 128
    $region41: #{tpu_custom_call.1} parent=1 // pred_fallthru
      _
    // Predicated region
    $region42: #{tpu_custom_call.1} parent=1 // pred_check
      _
    $region43: #{tpu_custom_call.1} parent=1 // pred_check_branch
      %78 = sbr.rel (0) target = $region45
    $region44: #{tpu_custom_call.1} parent=1 // pred_region
      %79 = dma.done [#allocation6], 256
    $region45: #{tpu_custom_call.1} parent=1 // pred_fallthru
      _
    // Predicated region
    $region46: #{tpu_custom_call.1} parent=1 // pred_check
      _
    $region47: #{tpu_custom_call.1} parent=1 // pred_check_branch
      %81 = sbr.rel (0) target = $region49
    $region48: #{tpu_custom_call.1} parent=1 // pred_region
      %82 = dma.done [#allocation6], 1024
    $region49: #{tpu_custom_call.1} parent=1 // pred_fallthru
      _
    // Predicated region
    $region50: #{tpu_custom_call.1} parent=1 // pred_check
      _
    $region51: #{tpu_custom_call.1} parent=1 // pred_check_branch
      %84 = sbr.rel (0) target = $region53
    $region52: #{tpu_custom_call.1} parent=1 // pred_region
      %85 = dma.done [#allocation9], 1024
    $region53: #{tpu_custom_call.1} parent=1 // pred_fallthru
      _
    %v87 = vld [vmem:[#allocation2] sm:$0xff]
    %v88 = vpack.c.bf16 %v87, %v87
    %v89 = vld [vmem:[#allocation5] sm:$0xf]
    %v90 = vld [vmem:[#allocation5 + $0x4] sm:$0xf]
    %v91 = vld [vmem:[#allocation5 + $0x8] sm:$0xf]
    %v92 = vld [vmem:[#allocation5 + $0xc] sm:$0xf]
    %v97 = vunpack.c.l.b16 %v89
    %v98 = vunpack.c.l.b16 %v90
    %v99 = vunpack.c.l.b16 %v91
    %v100 = vunpack.c.l.b16 %v92
    %v101 = vpack.c.b16 %v98, %v97
    %v102 = vpack.c.b16 %v100, %v99
    %vm105 = vcmask 261120
    %v107 = vsel %vm105, %v88, 0
    %109 = vmatprep.subr.bf16.mxu0 0
    %110 = vmatpush1.bf16.msra.mxu0 %v101
    %111 = vmatprep.subr.bf16.mxu0 0
    %112 = vmatpush1.bf16.msra.mxu0 %v102
    %113 = vmatprep.subr.bf16.mxu0 0
    %114 = vmatpush1.bf16.msra.mxu0 0
    %115 = vmatprep.subr.bf16.mxu0 0
    %116 = vmatpush1.bf16.msra.mxu0 0
    %117 = vmatprep.subr.bf16.mxu0 0
    %118 = vmatpush1.bf16.msra.mxu0 0
    %119 = vmatprep.subr.bf16.mxu0 0
    %120 = vmatpush1.bf16.msra.mxu0 0
    %121 = vmatprep.subr.bf16.mxu0 0
    %122 = vmatpush1.bf16.msra.mxu0 0
    %123 = vmatprep.subr.bf16.mxu0 0
    %124 = vmatpush1.bf16.msra.mxu0 0
    %125 = vmatprep.subr.bf16.mxu0 0
    %126 = vmatpush1.bf16.msra.mxu0 0
    %127 = vmatprep.subr.bf16.mxu0 0
    %128 = vmatpush1.bf16.msra.mxu0 0
    %129 = vmatprep.subr.bf16.mxu0 0
    %130 = vmatpush1.bf16.msra.mxu0 0
    %131 = vmatprep.subr.bf16.mxu0 0
    %132 = vmatpush1.bf16.msra.mxu0 0
    %133 = vmatprep.subr.bf16.mxu0 0
    %134 = vmatpush1.bf16.msra.mxu0 0
    %135 = vmatprep.subr.bf16.mxu0 0
    %136 = vmatpush1.bf16.msra.mxu0 0
    %137 = vmatprep.subr.bf16.mxu0 0
    %138 = vmatpush1.bf16.msra.mxu0 0
    %139 = vmatprep.subr.bf16.mxu0 0
    %140 = vmatpush1.bf16.msra.mxu0 0
    %141 = vmatprep.mubr.bf16.mxu0 0
    %142 = vmatmul.mubr.bf16.gmra.mrb[0].mxu0 %v107
    %v143 = vpop.f32.mrb[0].mxu0
    %v144 = vadd.f32 0.0, %v143
    %v145 = vpop.f32.mrb[0].mxu0
    %v146 = vpop.f32.mrb[0].mxu0
    %v147 = vpop.f32.mrb[0].mxu0
    %148 = vdwg.mxu0
    %v149 = vld [vmem:[%s2] sm:$0x1]
    %v150 = vld [vmem:[%s3] sm:$0x1]
    %v151 = vrot.slane %v144, 4
    %v152 = vadd.f32 %v144, %v151
    %v153 = vrot.slane %v152, 2
    %v154 = vadd.f32 %v152, %v153
    %v155 = vrot.slane %v154, 1
    %v156 = vadd.f32 %v154, %v155
    %v157 = vrcp.pop 8.0
    %v158 = vmul.f32 %v156, %v157
    %v159 = vsub.f32 %v144, %v158
    %v160 = vmul.f32 %v159, %v159
    %v161 = vrot.slane %v160, 4
    %v162 = vadd.f32 %v160, %v161
    %v163 = vrot.slane %v162, 2
    %v164 = vadd.f32 %v162, %v163
    %v165 = vrot.slane %v164, 1
    %v166 = vadd.f32 %v164, %v165
    %v167 = vmul.f32 %v166, %v157
    %v168 = vadd.f32 %v167, 1e-05
    %v169 = vrsqrt.pop %v168
    %v170 = vmul.f32 %v149, %v169
    %v172 = vlaneseq
    %v173 = vshrl.u32 %v172, 7
    %v174 = vsub.s32 0, %v173
    %v175 = vrot.slane %v170, %v174
    %v177 = vmul.f32 %v159, %v175
    %v179 = vlaneseq
    %v180 = vshrl.u32 %v179, 7
    %v181 = vsub.s32 0, %v180
    %v182 = vrot.slane %v150, %v181
    %v184 = vadd.f32 %v177, %v182
    %v185 = vmax.f32 %v184, 0.0
    %v186 = vpack.c.bf16 %v185, %v185
    %v187 = vld [vmem:[#allocation7] sm:$0xf]
    %v188 = vld [vmem:[#allocation7 + $0x4] sm:$0xf]
    %v189 = vld [vmem:[#allocation7 + $0x8] sm:$0xf]
    %v190 = vld [vmem:[#allocation7 + $0xc] sm:$0xf]
    %v191 = vld [vmem:[#allocation7 + $0x10] sm:$0xf]
    %v192 = vld [vmem:[#allocation7 + $0x14] sm:$0xf]
    %v193 = vld [vmem:[#allocation7 + $0x18] sm:$0xf]
    %v194 = vld [vmem:[#allocation7 + $0x1c] sm:$0xf]
    %v195 = vld [vmem:[#allocation7 + $0x20] sm:$0xf]
    %v196 = vld [vmem:[#allocation7 + $0x24] sm:$0xf]
    %v197 = vld [vmem:[#allocation7 + $0x28] sm:$0xf]
    %v198 = vld [vmem:[#allocation7 + $0x2c] sm:$0xf]
    %v199 = vld [vmem:[#allocation7 + $0x30] sm:$0xf]
    %v200 = vld [vmem:[#allocation7 + $0x34] sm:$0xf]
    %v201 = vld [vmem:[#allocation7 + $0x38] sm:$0xf]
    %v202 = vld [vmem:[#allocation7 + $0x3c] sm:$0xf]
    %v219 = vunpack.c.l.b16 %v187
    %v220 = vunpack.c.l.b16 %v188
    %v221 = vunpack.c.l.b16 %v189
    %v222 = vunpack.c.l.b16 %v190
    %v223 = vunpack.c.l.b16 %v191
    %v224 = vunpack.c.l.b16 %v192
    %v225 = vunpack.c.l.b16 %v193
    %v226 = vunpack.c.l.b16 %v194
    %v227 = vunpack.c.l.b16 %v195
    %v228 = vunpack.c.l.b16 %v196
    %v229 = vunpack.c.l.b16 %v197
    %v230 = vunpack.c.l.b16 %v198
    %v231 = vunpack.c.l.b16 %v199
    %v232 = vunpack.c.l.b16 %v200
    %v233 = vunpack.c.l.b16 %v201
    %v234 = vunpack.c.l.b16 %v202
    %v235 = vpack.c.b16 %v220, %v219
    %v236 = vpack.c.b16 %v222, %v221
    %v237 = vpack.c.b16 %v224, %v223
    %v238 = vpack.c.b16 %v226, %v225
    %v239 = vpack.c.b16 %v228, %v227
    %v240 = vpack.c.b16 %v230, %v229
    %v241 = vpack.c.b16 %v232, %v231
    %v242 = vpack.c.b16 %v234, %v233
    %251 = vmatprep.subr.bf16.mxu0 0
    %252 = vmatpush1.bf16.msra.mxu0 %v235
    %253 = vmatprep.subr.bf16.mxu0 0
    %254 = vmatpush1.bf16.msra.mxu0 %v236
    %255 = vmatprep.subr.bf16.mxu0 0
    %256 = vmatpush1.bf16.msra.mxu0 %v237
    %257 = vmatprep.subr.bf16.mxu0 0
    %258 = vmatpush1.bf16.msra.mxu0 %v238
    %259 = vmatprep.subr.bf16.mxu0 0
    %260 = vmatpush1.bf16.msra.mxu0 %v239
    %261 = vmatprep.subr.bf16.mxu0 0
    %262 = vmatpush1.bf16.msra.mxu0 %v240
    %263 = vmatprep.subr.bf16.mxu0 0
    %264 = vmatpush1.bf16.msra.mxu0 %v241
    %265 = vmatprep.subr.bf16.mxu0 0
    %266 = vmatpush1.bf16.msra.mxu0 %v242
    %267 = vmatprep.subr.bf16.mxu0 0
    %268 = vmatpush1.bf16.msra.mxu0 0
    %269 = vmatprep.subr.bf16.mxu0 0
    %270 = vmatpush1.bf16.msra.mxu0 0
    %271 = vmatprep.subr.bf16.mxu0 0
    %272 = vmatpush1.bf16.msra.mxu0 0
    %273 = vmatprep.subr.bf16.mxu0 0
    %274 = vmatpush1.bf16.msra.mxu0 0
    %275 = vmatprep.subr.bf16.mxu0 0
    %276 = vmatpush1.bf16.msra.mxu0 0
    %277 = vmatprep.subr.bf16.mxu0 0
    %278 = vmatpush1.bf16.msra.mxu0 0
    %279 = vmatprep.subr.bf16.mxu0 0
    %280 = vmatpush1.bf16.msra.mxu0 0
    %281 = vmatprep.subr.bf16.mxu0 0
    %282 = vmatpush1.bf16.msra.mxu0 0
    %283 = vmatprep.mubr.bf16.mxu0 0
    %284 = vmatmul.mubr.bf16.gmra.mrb[0].mxu0 %v186
    %v285 = vpop.f32.mrb[0].mxu0
    %v286 = vadd.f32 0.0, %v285
    %v287 = vpop.f32.mrb[0].mxu0
    %v288 = vpop.f32.mrb[0].mxu0
    %v289 = vpop.f32.mrb[0].mxu0
    %290 = vdwg.mxu0
    %v291 = vld [vmem:[%s5] sm:$0x1]
    %v292 = vld [vmem:[%s6] sm:$0x1]
    %v293 = vrot.slane %v286, 4
    %v294 = vadd.f32 %v286, %v293
    %v295 = vrot.slane %v294, 2
    %v296 = vadd.f32 %v294, %v295
    %v297 = vrot.slane %v296, 1
    %v298 = vadd.f32 %v296, %v297
    %v299 = vmul.f32 %v298, %v157
    %v300 = vsub.f32 %v286, %v299
    %v301 = vmul.f32 %v300, %v300
    %v302 = vrot.slane %v301, 4
    %v303 = vadd.f32 %v301, %v302
    %v304 = vrot.slane %v303, 2
    %v305 = vadd.f32 %v303, %v304
    %v306 = vrot.slane %v305, 1
    %v307 = vadd.f32 %v305, %v306
    %v308 = vmul.f32 %v307, %v157
    %v309 = vadd.f32 %v308, 1e-05
    %v310 = vrsqrt.pop %v309
    %v311 = vmul.f32 %v291, %v310
    %v313 = vlaneseq
    %v314 = vshrl.u32 %v313, 7
    %v315 = vsub.s32 0, %v314
    %v316 = vrot.slane %v311, %v315
    %v318 = vmul.f32 %v300, %v316
    %v320 = vlaneseq
    %v321 = vshrl.u32 %v320, 7
    %v322 = vsub.s32 0, %v321
    %v323 = vrot.slane %v292, %v322
    %v325 = vadd.f32 %v318, %v323
    %v326 = vmax.f32 %v325, 0.0
    %v327 = vpack.c.bf16 %v326, %v326
    %v328 = vld [vmem:[#allocation8] sm:$0xf]
    %v329 = vld [vmem:[#allocation8 + $0x4] sm:$0xf]
    %v330 = vld [vmem:[#allocation8 + $0x8] sm:$0xf]
    %v331 = vld [vmem:[#allocation8 + $0xc] sm:$0xf]
    %v332 = vld [vmem:[#allocation8 + $0x10] sm:$0xf]
    %v333 = vld [vmem:[#allocation8 + $0x14] sm:$0xf]
    %v334 = vld [vmem:[#allocation8 + $0x18] sm:$0xf]
    %v335 = vld [vmem:[#allocation8 + $0x1c] sm:$0xf]
    %v336 = vld [vmem:[#allocation8 + $0x20] sm:$0xf]
    %v337 = vld [vmem:[#allocation8 + $0x24] sm:$0xf]
    %v338 = vld [vmem:[#allocation8 + $0x28] sm:$0xf]
    %v339 = vld [vmem:[#allocation8 + $0x2c] sm:$0xf]
    %v340 = vld [vmem:[#allocation8 + $0x30] sm:$0xf]
    %v341 = vld [vmem:[#allocation8 + $0x34] sm:$0xf]
    %v342 = vld [vmem:[#allocation8 + $0x38] sm:$0xf]
    %v343 = vld [vmem:[#allocation8 + $0x3c] sm:$0xf]
    %v344 = vld [vmem:[%s8] sm:$0x1]
    %v346 = vlaneseq
    %v347 = vshrl.u32 %v346, 7
    %v348 = vsub.s32 0, %v347
    %v349 = vrot.slane %v344, %v348
    %v367 = vunpack.c.l.b16 %v328
    %v368 = vunpack.c.l.b16 %v329
    %v369 = vunpack.c.l.b16 %v330
    %v370 = vunpack.c.l.b16 %v331
    %v371 = vunpack.c.l.b16 %v332
    %v372 = vunpack.c.l.b16 %v333
    %v373 = vunpack.c.l.b16 %v334
    %v374 = vunpack.c.l.b16 %v335
    %v375 = vunpack.c.l.b16 %v336
    %v376 = vunpack.c.l.b16 %v337
    %v377 = vunpack.c.l.b16 %v338
    %v378 = vunpack.c.l.b16 %v339
    %v379 = vunpack.c.l.b16 %v340
    %v380 = vunpack.c.l.b16 %v341
    %v381 = vunpack.c.l.b16 %v342
    %v382 = vunpack.c.l.b16 %v343
    %v383 = vpack.c.b16 %v368, %v367
    %v384 = vpack.c.b16 %v370, %v369
    %v385 = vpack.c.b16 %v372, %v371
    %v386 = vpack.c.b16 %v374, %v373
    %v387 = vpack.c.b16 %v376, %v375
    %v388 = vpack.c.b16 %v378, %v377
    %v389 = vpack.c.b16 %v380, %v379
    %v390 = vpack.c.b16 %v382, %v381
    %399 = vmatprep.subr.bf16.mxu0 0
    %400 = vmatpush1.bf16.msra.mxu0 %v383
    %401 = vmatprep.subr.bf16.mxu0 0
    %402 = vmatpush1.bf16.msra.mxu0 %v384
    %403 = vmatprep.subr.bf16.mxu0 0
    %404 = vmatpush1.bf16.msra.mxu0 %v385
    %405 = vmatprep.subr.bf16.mxu0 0
    %406 = vmatpush1.bf16.msra.mxu0 %v386
    %407 = vmatprep.subr.bf16.mxu0 0
    %408 = vmatpush1.bf16.msra.mxu0 %v387
    %409 = vmatprep.subr.bf16.mxu0 0
    %410 = vmatpush1.bf16.msra.mxu0 %v388
    %411 = vmatprep.subr.bf16.mxu0 0
    %412 = vmatpush1.bf16.msra.mxu0 %v389
    %413 = vmatprep.subr.bf16.mxu0 0
    %414 = vmatpush1.bf16.msra.mxu0 %v390
    %415 = vmatprep.subr.bf16.mxu0 0
    %416 = vmatpush1.bf16.msra.mxu0 0
    %417 = vmatprep.subr.bf16.mxu0 0
    %418 = vmatpush1.bf16.msra.mxu0 0
    %419 = vmatprep.subr.bf16.mxu0 0
    %420 = vmatpush1.bf16.msra.mxu0 0
    %421 = vmatprep.subr.bf16.mxu0 0
    %422 = vmatpush1.bf16.msra.mxu0 0
    %423 = vmatprep.subr.bf16.mxu0 0
    %424 = vmatpush1.bf16.msra.mxu0 0
    %425 = vmatprep.subr.bf16.mxu0 0
    %426 = vmatpush1.bf16.msra.mxu0 0
    %427 = vmatprep.subr.bf16.mxu0 0
    %428 = vmatpush1.bf16.msra.mxu0 0
    %429 = vmatprep.subr.bf16.mxu0 0
    %430 = vmatpush1.bf16.msra.mxu0 0
    %431 = vmatprep.mubr.bf16.mxu0 0
    %432 = vmatmul.mubr.bf16.gmra.mrb[0].mxu0 %v327
    %v433 = vpop.f32.mrb[0].mxu0
    %v434 = vadd.f32 %v349, %v433
    %v435 = vpop.f32.mrb[0].mxu0
    %v436 = vpop.f32.mrb[0].mxu0
    %v437 = vpop.f32.mrb[0].mxu0
    %438 = vdwg.mxu0
    %439 = vst [vmem:[#allocation10] sm:$0xff] %v434
    // Predicated region
    $region54: #{tpu_custom_call.1} parent=1 // pred_check
      _
    $region55: #{tpu_custom_call.1} parent=1 // pred_check_branch
      %441 = sbr.rel (0) target = $region57
    $region56: #{tpu_custom_call.1} parent=1 // pred_region
      %s443 = ssub.s32 128, 128
      %444 = vsyncadd [#allocation4], %s443
      %s446 = sshll.u32 [#allocation10], 4
      %s447 = int_to_ptr.vmem [resolvable:$true] %s446
      %449 = dma.vmem_to_hbm [thread:$0]  %s447, 128, %s9, [#allocation4]
    $region57: #{tpu_custom_call.1} parent=1 // pred_fallthru
      _
    // Predicated region
    $region58: #{tpu_custom_call.1} parent=1 // pred_check
      _
    $region59: #{tpu_custom_call.1} parent=1 // pred_check_branch
      %451 = sbr.rel (0) target = $region61
    $region60: #{tpu_custom_call.1} parent=1 // pred_region
      %452 = dma.done [#allocation4], 128
    $region61: #{tpu_custom_call.1} parent=1 // pred_fallthru
      _
    %453 = vsyncpa [#allocation3], 1
    %454 = vsyncpa [#allocation6], 1
    %455 = vsyncpa [#allocation9], 1
    %456 = vsyncpa [#allocation4], 1

</llo_original>
